<compile_context>
chip_gen: v7x
topology: tpu7x:2x2x1
jax: 0.10.0
libtpu: 0.0.40
codegen_flags: <defaults>
</compile_context>

<pallas_src>
from typing import Optional

import jax
import jax.numpy as jnp
import numpy as np
from jax.experimental import pallas as pl
from jax.experimental.pallas import tpu as pltpu

_LANE_CHOICES = (1024, 512, 256, 128)  # preferred lane-dense widths (x128)
_PAD_LANES = 1024                      # slab width for the ragged (padded) path
_TARGET_BLOCK_BYTES = 4 << 20          # ~4 MiB per block
_VMEM_LIMIT_BYTES = 32 << 20           # fits v5e/v6e/v7x; covers 16 MiB of buffers
_MIN_PALLAS_ELEMS = 1 << 16            # aligned crossover vs fused jnp.where


def _round_up(v: int, m: int) -> int:
    return (v + m - 1) // m * m


def _threshold_kernel(thr_ref, x_ref, o_ref):
    x = x_ref[...]
    # Matches torch.tensor(threshold, dtype=x.dtype) before the compare.
    theta = thr_ref[0].astype(x.dtype)
    o_ref[...] = jnp.where(jnp.abs(x) < theta, jnp.zeros_like(x), x)


def _pick_lanes(num_elems: int) -> Optional[int]:
    for lanes in _LANE_CHOICES:
        if num_elems % lanes == 0:
            return lanes
    return None


def _pick_block_rows(rows: int, lanes: int, itemsize: int) -> int:
    total_bytes = rows * lanes * itemsize
    if total_bytes <= _TARGET_BLOCK_BYTES:
        if rows >= 16:
            # >=2 grid steps so the "parallel" axis shards across both v7x TCs.
            return _round_up(-(-rows // 2), 8)
        return rows  # block spans the full (small) array extent — always legal
    block_rows = (_TARGET_BLOCK_BYTES // itemsize) // lanes
    return max(8, (block_rows // 8) * 8)


def _run_pallas(x2d, threshold, *, alias_input: bool):
    rows, lanes = x2d.shape
    itemsize = x2d.dtype.itemsize
    block_rows = _pick_block_rows(rows, lanes, itemsize)
    grid = pl.cdiv(rows, block_rows)
    thr = jnp.asarray([threshold], dtype=jnp.float32)

    kwargs = {}
    if alias_input:
        kwargs["input_output_aliases"] = {1: 0}

    return pl.pallas_call(
        _threshold_kernel,
        out_shape=jax.ShapeDtypeStruct((rows, lanes), x2d.dtype),
        grid_spec=pltpu.PrefetchScalarGridSpec(
            num_scalar_prefetch=0,
            grid=(grid,),
            in_specs=[
                pl.BlockSpec(memory_space=pltpu.MemorySpace.SMEM),
                pl.BlockSpec((block_rows, lanes), lambda i: (i, 0)),
            ],
            out_specs=pl.BlockSpec((block_rows, lanes), lambda i: (i, 0)),
        ),
        compiler_params=pltpu.CompilerParams(
            dimension_semantics=("parallel",),
            vmem_limit_bytes=_VMEM_LIMIT_BYTES,
        ),
        cost_estimate=pl.CostEstimate(
            flops=3 * rows * lanes,
            transcendentals=0,
            bytes_accessed=2 * rows * lanes * itemsize,
        ),
        **kwargs,
    )(thr, x2d)


def threshold_filter(x, threshold, *, use_pallas: Optional[bool] = None):
    """Pallas implementation of ThresholdFilter.forward on a dense tensor."""
    num_elems = int(np.prod(x.shape))
    if num_elems == 0:
        return x

    lanes = _pick_lanes(num_elems)
    if use_pallas is None:
        # Alignment-aware dispatch: ragged shapes would need pad + slice (two
        # extra HBM passes) so the fused XLA elementwise op wins there.
        use_pallas = (lanes is not None) and (num_elems >= _MIN_PALLAS_ELEMS)

    if not use_pallas:
        theta = jnp.asarray(threshold, dtype=x.dtype)
        return jnp.where(jnp.abs(x) < theta, jnp.zeros_like(x), x)

    if lanes is not None:
        # Zero-copy fast path: contiguous reshape to a lane-dense 2D slab.
        x2d = x.reshape(num_elems // lanes, lanes)
        out2d = _run_pallas(x2d, threshold, alias_input=False)
        return out2d.reshape(x.shape)

    # Ragged path (reached only when Pallas is forced): pad the flat tail up
    # to one lane multiple.  The padded slab is a wrapper temporary, so it is
    # safe to alias into the output buffer.
    padded = _round_up(num_elems, _PAD_LANES)
    x2d = jnp.pad(x.reshape(-1), (0, padded - num_elems)).reshape(-1, _PAD_LANES)
    out2d = _run_pallas(x2d, threshold, alias_input=True)
    return out2d.reshape(-1)[:num_elems].reshape(x.shape)


class ThresholdFilter:
    """JAX/Pallas port of reachnes ThresholdFilter (dense path)."""

    def __init__(self, threshold: float, dense2sparse: bool):
        self.threshold = float(threshold)
        self.dense2sparse = dense2sparse  # TODO(synk): sparse output unsupported

    @classmethod
    def create_from_graph_size(cls, num_nodes: int, num_edges: int,
                               dense2sparse: bool):
        threshold = 1.0 / np.sqrt((num_nodes + 1) * (num_edges + 1))
        return cls(threshold=threshold, dense2sparse=dense2sparse)

    def __call__(self, x, use_pallas: Optional[bool] = None):
        return threshold_filter(x, self.threshold, use_pallas=use_pallas)


def _ref(x, threshold):
    theta = jnp.asarray(threshold, dtype=x.dtype)
    return jnp.where(jnp.abs(x) < theta, jnp.zeros_like(x), x)


if __name__ == "__main__":
    key = jax.random.PRNGKey(0)
    k1, k2, k3 = jax.random.split(key, 3)

    # Case 1: small reachability stack (T=2, N=32) — aligned zero-copy path
    # (2048 elems -> (2, 1024) slab), forced through Pallas.
    T, N = 2, 32
    x1 = jax.random.normal(k1, (T, N, N), dtype=jnp.float32) * 0.1
    filt = ThresholdFilter.create_from_graph_size(
        num_nodes=N, num_edges=64, dense2sparse=False)
    out1 = jax.block_until_ready(filt(x1, use_pallas=True))
    np.testing.assert_allclose(np.asarray(out1),
                               np.asarray(_ref(x1, filt.threshold)),
                               rtol=0.0, atol=0.0)
    assert out1.shape == x1.shape and out1.dtype == x1.dtype

    # Case 2: ragged size (3*17*19 = 969 elems) — exercises the padded path
    # (+ input/output aliasing) with a different threshold through the SAME
    # compiled kernel (SMEM scalar, no retrace).
    x2 = jax.random.normal(k2, (3, 17, 19), dtype=jnp.float32) * 0.1
    filt2 = ThresholdFilter(threshold=0.05, dense2sparse=False)
    out2 = jax.block_until_ready(filt2(x2, use_pallas=True))
    np.testing.assert_allclose(np.asarray(out2), np.asarray(_ref(x2, 0.05)),
                               rtol=0.0, atol=0.0)
    assert out2.shape == x2.shape and out2.dtype == x2.dtype

    # Case 3: aligned (4, 64, 128) = 32768 elems — exercises the >=2-grid-step
    # (megacore) split on the zero-copy path.
    x3 = jax.random.normal(k3, (4, 64, 128), dtype=jnp.float32) * 0.1
    out3 = jax.block_until_ready(filt(x3, use_pallas=True))
    np.testing.assert_allclose(np.asarray(out3),
                               np.asarray(_ref(x3, filt.threshold)),
                               rtol=0.0, atol=0.0)

    # Case 4: auto-dispatch (small / tiny inputs take the fused jnp path).
    out4 = jax.block_until_ready(filt(x1))
    np.testing.assert_allclose(np.asarray(out4),
                               np.asarray(_ref(x1, filt.threshold)),
                               rtol=0.0, atol=0.0)

    print("KERNEL_OK")
</pallas_src>

<mosaic_0001>
module attributes {stable_mosaic.version = 11 : i64} {
  func.func @_threshold_kernel(%arg0: i32, %arg1: memref<1xf32, #tpu.memory_space<smem>>, %arg2: memref<2x1024xf32, #tpu.memory_space<vmem>>, %arg3: memref<2x1024xf32, #tpu.memory_space<vmem>>) attributes {dimension_semantics = [#tpu.dimension_semantics<parallel>], iteration_bounds = array<i64: 1>, scalar_prefetch = 0 : i64, scratch_operands = 0 : i64, tpu.core_type = #tpu.core_type<tc>, window_params = [{transform_indices = @transform_0, window_bounds = array<i64: 1>}, {transform_indices = @transform_1, window_bounds = array<i64: 2, 1024>}, {transform_indices = @transform_2, window_bounds = array<i64: 2, 1024>}]} {
    %c0 = arith.constant 0 : index
    %c0_0 = arith.constant 0 : index
    %0 = vector.load %arg2[%c0, %c0_0] : memref<2x1024xf32, #tpu.memory_space<vmem>>, vector<2x1024xf32>
    %c0_1 = arith.constant 0 : index
    %1 = memref.load %arg1[%c0_1] : memref<1xf32, #tpu.memory_space<smem>>
    %2 = math.absf %0 : vector<2x1024xf32>
    %3 = vector.broadcast %1 : f32 to vector<2x1024xf32>
    %4 = arith.cmpf olt, %2, %3 : vector<2x1024xf32>
    %cst = arith.constant 0.000000e+00 : f32
    %5 = vector.broadcast %cst : f32 to vector<2x1024xf32>
    %6 = arith.select %4, %5, %0 : vector<2x1024xi1>, vector<2x1024xf32>
    %c0_2 = arith.constant 0 : index
    %c0_3 = arith.constant 0 : index
    %7 = vector.load %arg3[%c0_2, %c0_3] : memref<2x1024xf32, #tpu.memory_space<vmem>>, vector<2x1024xf32>
    tpu.vector_store %arg3[%c0_2, %c0_3], %6 {strides = array<i32>} : memref<2x1024xf32, #tpu.memory_space<vmem>>, vector<2x1024xf32>,
    return
  }
  func.func @transform_0(%arg0: i32) -> i32 {
    %c0_i32 = arith.constant 0 : i32
    %c0_i32_0 = arith.constant 0 : i32
    return %c0_i32 : i32
  }
  func.func @transform_1(%arg0: i32) -> (i32, i32) {
    %c0_i32 = arith.constant 0 : i32
    %c0_i32_0 = arith.constant 0 : i32
    return %arg0, %c0_i32 : i32, i32
  }
  func.func @transform_2(%arg0: i32) -> (i32, i32) {
    %c0_i32 = arith.constant 0 : i32
    %c0_i32_0 = arith.constant 0 : i32
    return %arg0, %c0_i32 : i32, i32
  }
}

</mosaic_0001>

<llo_original>
// kernel: tpu_custom_call.1
$region0: #{tpu_custom_call.1}
  #allocation0 [shape = 'u32[]', space=smem, size = 0x4, offset = 0x4, fixed_abs, tag = 'smem constant byte address 0x4 - core index']
  #allocation1 [shape = 'u32[144,128]{1,0:T(1,128)}', space=vmem, size = 0x12000, scoped, tag = 'internal scratch']
  #allocation2 [shape = 'f32[1]{0:T(128)S(6)}', space=smem, size = 0x200, scoped, tag = 'scoped memory for tpu_custom_call.1']
  %s0 = inlined_call_operand.<no memory space> [shape: f32[1], index: 0, kind: input, shape index: {}]
  %s1 = inlined_call_operand.hbm [shape: f32[2,1024], index: 1, kind: input, shape index: {}]
  %s2 = inlined_call_operand.hbm [shape: f32[2,1024], index: 2, kind: output, shape index: {}]
  %s3 = sld [smem:[#allocation0]]
  $region22: #{tpu_custom_call.1} parent=0
    _
  %s5 = ssub.s32 1, %s3
  %s6 = scalar_select 0, %s5, %s3
  %7 = sst [smem:[#allocation2]] %s0
  $region1: #{tpu_custom_call.1} parent=0
    #allocation3 [shape = 'u8[8192]{0}', space=vmem, size = 0x2000, scoped, tag = 'input window, operand 1, single buffered']
    #allocation4 [shape = 's32[1]{0}', space=sflag, size = 0x4, scoped, tag = 'scoped memory for tpu_custom_call.1']
    #allocation5 [shape = 's32[1]{0}', space=sflag, size = 0x4, scoped, tag = 'scoped memory for tpu_custom_call.1']
    #allocation6 [shape = 'u8[8192]{0}', space=vmem, size = 0x2000, scoped, tag = 'output window, operand 0, single buffered']
    %8 = vsyncpa [#allocation4], 0
    %9 = vsyncpa [#allocation5], 0
    // Predicated region
    $region2: #{tpu_custom_call.1} parent=1 // pred_check
      _
    $region3: #{tpu_custom_call.1} parent=1 // pred_check_branch
      %11 = sbr.rel (0) target = $region5
    $region4: #{tpu_custom_call.1} parent=1 // pred_region
      _
    $region5: #{tpu_custom_call.1} parent=1 // pred_fallthru
      _
    // Predicated region
    $region6: #{tpu_custom_call.1} parent=1 // pred_check
      _
    $region7: #{tpu_custom_call.1} parent=1 // pred_check_branch
      %13 = sbr.rel (0) target = $region9
    $region8: #{tpu_custom_call.1} parent=1 // pred_region
      %s15 = ssub.s32 256, 256
      %16 = vsyncadd [#allocation4], %s15
      %s18 = sshll.u32 [#allocation3], 4
      %s19 = int_to_ptr.vmem [resolvable:$true] %s18
      %21 = dma.hbm_to_vmem [thread:$0]  %s1, 256, %s19, [#allocation4]
    $region9: #{tpu_custom_call.1} parent=1 // pred_fallthru
      _
    // Predicated region
    $region10: #{tpu_custom_call.1} parent=1 // pred_check
      _
    $region11: #{tpu_custom_call.1} parent=1 // pred_check_branch
      %23 = sbr.rel (0) target = $region13
    $region12: #{tpu_custom_call.1} parent=1 // pred_region
      %24 = dma.done [#allocation4], 256
    $region13: #{tpu_custom_call.1} parent=1 // pred_fallthru
      _
    %v25 = vld [vmem:[#allocation3] sm:$0xff]
    %v26 = vld [vmem:[#allocation3 + $0x8] sm:$0xff]
    %s27 = sld [smem:[#allocation2]]
    %v28 = vand.u32 2147483647, %v25
    %v29 = vand.u32 2147483647, %v26
    %v30 = vstv %s27
    %vm31 = vcmp.lt.f32.partialorder %v28, %v30
    %vm32 = vcmp.lt.f32.partialorder %v29, %v30
    %v33 = vsel %vm31, 0.0, %v25
    %v34 = vsel %vm32, 0.0, %v26
    %35 = vst [vmem:[#allocation6] sm:$0xff] %v33
    %36 = vst [vmem:[#allocation6 + $0x8] sm:$0xff] %v34
    // Predicated region
    $region14: #{tpu_custom_call.1} parent=1 // pred_check
      _
    $region15: #{tpu_custom_call.1} parent=1 // pred_check_branch
      %38 = sbr.rel (0) target = $region17
    $region16: #{tpu_custom_call.1} parent=1 // pred_region
      %s40 = ssub.s32 256, 256
      %41 = vsyncadd [#allocation5], %s40
      %s43 = sshll.u32 [#allocation6], 4
      %s44 = int_to_ptr.vmem [resolvable:$true] %s43
      %46 = dma.vmem_to_hbm [thread:$0]  %s44, 256, %s2, [#allocation5]
    $region17: #{tpu_custom_call.1} parent=1 // pred_fallthru
      _
    // Predicated region
    $region18: #{tpu_custom_call.1} parent=1 // pred_check
      _
    $region19: #{tpu_custom_call.1} parent=1 // pred_check_branch
      %48 = sbr.rel (0) target = $region21
    $region20: #{tpu_custom_call.1} parent=1 // pred_region
      %49 = dma.done [#allocation5], 256
    $region21: #{tpu_custom_call.1} parent=1 // pred_fallthru
      _
    %50 = vsyncpa [#allocation4], 1
    %51 = vsyncpa [#allocation5], 1

</llo_original>
